<compile_context>
chip_gen: v7x
topology: tpu7x:2x2x1
jax: 0.10.0
libtpu: 0.0.40
codegen_flags: <defaults>
</compile_context>

<pallas_src>
import functools

import jax
import jax.numpy as jnp
from jax import lax
from jax.experimental import pallas as pl
from jax.experimental.pallas import tpu as pltpu


def _ntxent_denom_kernel(zrow_ref, zcolt_ref, out_ref, acc_ref, *, inv_temp):
    """One (row-tile r, col-tile c) step of the streaming NT-Xent denominator.

    zrow_ref : (t, D)  rows of z, pre-scaled by 1/temperature.
    zcolt_ref: (D, t)  columns of z (pre-transposed, unscaled).
    out_ref  : (t, 1)  per-row log(sum_{k != row} exp(sim/T - 1/T)).
    acc_ref  : (t, 1)  f32 running exp-row-sum (VMEM scratch).
    """
    r = pl.program_id(0)
    c = pl.program_id(1)

    @pl.when(c == 0)
    def _():
        acc_ref[...] = jnp.zeros_like(acc_ref)

    # Single MXU contraction per step: (t, D) x (D, t) -> (t, t), f32 accumulate.
    s = jnp.dot(zrow_ref[...], zcolt_ref[...],
                preferred_element_type=jnp.float32)

    # Max-shifted exp: rows are pre-scaled by 1/T and |sim| <= 1, so s <= 1/T.
    # exp(s - 1/T) <= ~1  ->  no float32 overflow for any temperature.
    e = jnp.exp(s - inv_temp)

    @pl.when(r != c)
    def _():
        acc_ref[...] += jnp.sum(e, axis=1, keepdims=True)

    @pl.when(r == c)
    def _():
        # Diagonal block: drop the self-similarity term exactly.  The
        # iota/compare/select only executes on these num_tiles blocks.
        t = e.shape[0]
        eye = (lax.broadcasted_iota(jnp.int32, (t, t), 0)
               == lax.broadcasted_iota(jnp.int32, (t, t), 1))
        acc_ref[...] += jnp.sum(jnp.where(eye, 0.0, e), axis=1, keepdims=True)

    @pl.when(c == pl.num_programs(1) - 1)
    def _():
        out_ref[...] = jnp.log(acc_ref[...])


def _pick_tile(n_rows, feat_dim, itemsize):
    """Largest square tile from (512, 256, 128) that divides n_rows, leaves
    >= 2 row tiles (keeps both v7x TensorCores busy on the 'parallel' axis)
    and fits a ~40 MiB VMEM budget; single full-extent tile for small batches."""
    budget = 40 << 20
    for t in (512, 256, 128):
        if n_rows % t != 0 or n_rows // t < 2:
            continue
        # 2 operand windows x 2 pipeline buffers + (t, t) f32 intermediates
        # (similarities + exp) + small accumulator/output blocks.
        need = 2 * 2 * t * feat_dim * itemsize + 2 * t * t * 4 + 4 * t * 4
        if need <= budget:
            return t
    # TODO(synk): pad 2B up to a multiple of 128 (masking the pad rows/cols)
    # instead of falling back to one full-extent tile for large odd batches.
    return n_rows


def simclr_loss(emb_i, emb_j, *, batch_size, temperature=0.07,
                compute_dtype=jnp.float32):
    """NT-Xent (SimCLR) loss. emb_i / emb_j: (batch_size, D).

    compute_dtype=jnp.bfloat16 feeds the MXU at native bf16 rate and halves
    the dominant column-stream DMA bytes (accumulation stays f32; expect
    ~0.1-1% relative error on the loss value).
    """
    assert emb_i.shape == emb_j.shape
    B, D = emb_i.shape
    assert B == batch_size
    inv_temp = float(1.0 / temperature)

    def _normalize(x):
        x = x.astype(jnp.float32)
        sumsq = jnp.sum(x * x, axis=1, keepdims=True)
        return x * lax.rsqrt(jnp.maximum(sumsq, 1e-24))

    z_i = _normalize(emb_i)
    z_j = _normalize(emb_j)

    # Positives: sim[b, b+B] == sim[b+B, b] == <z_i[b], z_j[b]>  (plain XLA).
    pos = jnp.sum(z_i * z_j, axis=1)                              # (B,)

    z = jnp.concatenate([z_i, z_j], axis=0)                       # (2B, D)
    n = 2 * B
    # Rows carry the 1/T prescale (fuses with the normalize multiply in XLA);
    # columns are stored pre-transposed so the kernel is a plain (m,k)x(k,n).
    z_rows = (z * jnp.float32(inv_temp)).astype(compute_dtype)    # (2B, D)
    z_cols_t = z.T.astype(compute_dtype)                          # (D, 2B)

    itemsize = jnp.dtype(compute_dtype).itemsize
    t = _pick_tile(n, D, itemsize)
    num_tiles = n // t

    vmem_need = 2 * 2 * t * D * itemsize + 2 * t * t * 4 + 4 * t * 4
    vmem_limit = int(min(max(2 * vmem_need, 32 << 20), 56 << 20))

    kernel = functools.partial(_ntxent_denom_kernel, inv_temp=inv_temp)

    log_denom = pl.pallas_call(
        kernel,
        out_shape=jax.ShapeDtypeStruct((n, 1), jnp.float32),
        grid_spec=pltpu.PrefetchScalarGridSpec(
            num_scalar_prefetch=0,
            grid=(num_tiles, num_tiles),
            in_specs=[
                pl.BlockSpec((t, D), lambda r, c: (r, 0)),   # row slab (scaled)
                pl.BlockSpec((D, t), lambda r, c: (0, c)),   # col slab (transposed)
                # TODO(synk): pipeline_mode=pl.Buffered(3) on the column spec if
                # profiling shows exposed DMA for small D.
            ],
            out_specs=pl.BlockSpec((t, 1), lambda r, c: (r, 0)),
            scratch_shapes=[pltpu.VMEM((t, 1), jnp.float32)],
        ),
        compiler_params=pltpu.CompilerParams(
            dimension_semantics=("parallel", "arbitrary"),
            vmem_limit_bytes=vmem_limit,
        ),
    )(z_rows, z_cols_t)

    # Undo the max shift (+1/T per row) and subtract the positives:
    #   loss_row = log(sum_{k != row} exp(sim/T)) - pos_row / T
    total = jnp.sum(log_denom) + n * inv_temp - 2.0 * jnp.sum(pos) * inv_temp
    return total / n


def _reference_ntxent(emb_i, emb_j, temperature):
    """Pure-JAX reference mirroring the PyTorch module."""
    B = emb_i.shape[0]

    def norm(x):
        nrm = jnp.linalg.norm(x, axis=1, keepdims=True)
        return x / jnp.maximum(nrm, 1e-12)

    z = jnp.concatenate([norm(emb_i), norm(emb_j)], axis=0)
    sim = z @ z.T
    pos = jnp.concatenate(
        [jnp.diagonal(sim, offset=B), jnp.diagonal(sim, offset=-B)], axis=0
    )
    mask = ~jnp.eye(2 * B, dtype=bool)
    bottom = jnp.sum(jnp.where(mask, jnp.exp(sim / temperature), 0.0), axis=1)
    loss_pair = -jnp.log(jnp.exp(pos / temperature) / bottom)
    return jnp.sum(loss_pair) / (2 * B)


if __name__ == "__main__":
    # Module config: batch_size=4 per-gpu, num_nodes=1, gpu_count=2 -> total B=8.
    per_gpu_batch, num_nodes, gpu_count = 4, 1, 2
    total_batch = per_gpu_batch * num_nodes * gpu_count
    hidden = 32
    temperature = 0.07

    key = jax.random.PRNGKey(0)
    k1, k2 = jax.random.split(key)
    emb_i = jax.random.normal(k1, (total_batch, hidden), dtype=jnp.float32)
    emb_j = jax.random.normal(k2, (total_batch, hidden), dtype=jnp.float32)

    ref = _reference_ntxent(emb_i, emb_j, temperature)

    # f32 path (matches the PyTorch forward semantics).
    loss = simclr_loss(
        emb_i, emb_j, batch_size=total_batch, temperature=temperature
    )
    loss = jax.block_until_ready(loss)
    assert jnp.allclose(loss, ref, rtol=1e-4, atol=1e-4), (loss, ref)

    # bf16 MXU path (native MXU rate, half the DMA bytes) — looser tolerance.
    loss_bf16 = simclr_loss(
        emb_i, emb_j, batch_size=total_batch, temperature=temperature,
        compute_dtype=jnp.bfloat16,
    )
    loss_bf16 = jax.block_until_ready(loss_bf16)
    assert jnp.allclose(loss_bf16, ref, rtol=5e-2, atol=5e-2), (loss_bf16, ref)

    print("KERNEL_OK")
</pallas_src>

<mosaic_0001>
module attributes {stable_mosaic.version = 11 : i64} {
  func.func @_ntxent_denom_kernel(%arg0: i32, %arg1: i32, %arg2: memref<16x32xf32, #tpu.memory_space<vmem>>, %arg3: memref<32x16xf32, #tpu.memory_space<vmem>>, %arg4: memref<16x1xf32, #tpu.memory_space<vmem>>, %arg5: memref<16x1xf32, #tpu.memory_space<vmem>>) attributes {dimension_semantics = [#tpu.dimension_semantics<parallel>, #tpu.dimension_semantics<arbitrary>], iteration_bounds = array<i64: 1, 1>, scalar_prefetch = 0 : i64, scratch_operands = 1 : i64, tpu.core_type = #tpu.core_type<tc>, window_params = [{transform_indices = @transform_0, window_bounds = array<i64: 16, 32>}, {transform_indices = @transform_1, window_bounds = array<i64: 32, 16>}, {transform_indices = @transform_2, window_bounds = array<i64: 16, 1>}]} {
    %c0_i32 = arith.constant 0 : i32
    %0 = arith.cmpi eq, %arg1, %c0_i32 : i32
    %1 = arith.extui %0 : i1 to i32
    %c0_i32_0 = arith.constant 0 : i32
    %2 = arith.cmpi ne, %1, %c0_i32_0 : i32
    scf.if %2 {
      %cst_9 = arith.constant 0.000000e+00 : f32
      %18 = vector.broadcast %cst_9 : f32 to vector<16x1xf32>
      %c0_10 = arith.constant 0 : index
      %c0_11 = arith.constant 0 : index
      %19 = vector.load %arg5[%c0_10, %c0_11] : memref<16x1xf32, #tpu.memory_space<vmem>>, vector<16x1xf32>
      tpu.vector_store %arg5[%c0_10, %c0_11], %18 {strides = array<i32>} : memref<16x1xf32, #tpu.memory_space<vmem>>, vector<16x1xf32>,
    } else {
    }
    %c0 = arith.constant 0 : index
    %c0_1 = arith.constant 0 : index
    %3 = vector.load %arg2[%c0, %c0_1] : memref<16x32xf32, #tpu.memory_space<vmem>>, vector<16x32xf32>
    %c0_2 = arith.constant 0 : index
    %c0_3 = arith.constant 0 : index
    %4 = vector.load %arg3[%c0_2, %c0_3] : memref<32x16xf32, #tpu.memory_space<vmem>>, vector<32x16xf32>
    %cst = arith.constant dense<0.000000e+00> : vector<16x16xf32>
    %5 = tpu.matmul %3, %4, %cst {dimension_numbers = #tpu.dot_dimension_numbers<[1], [0], [0], [1], [0, 0, 1, 1], [], []>} : vector<16x32xf32>, vector<32x16xf32>, vector<16x16xf32> -> vector<16x16xf32>
    %cst_4 = arith.constant 14.2857141 : f32
    %6 = vector.broadcast %cst_4 : f32 to vector<16x16xf32>
    %7 = arith.subf %5, %6 : vector<16x16xf32>
    %8 = math.exp %7 : vector<16x16xf32>
    %9 = arith.cmpi ne, %arg0, %arg1 : i32
    %10 = arith.extui %9 : i1 to i32
    %c0_i32_5 = arith.constant 0 : i32
    %11 = arith.cmpi ne, %10, %c0_i32_5 : i32
    scf.if %11 {
      %c0_9 = arith.constant 0 : index
      %c0_10 = arith.constant 0 : index
      %18 = vector.load %arg5[%c0_9, %c0_10] : memref<16x1xf32, #tpu.memory_space<vmem>>, vector<16x1xf32>
      %cst_11 = arith.constant dense<0.000000e+00> : vector<16xf32>
      %19 = vector.multi_reduction <add>, %8, %cst_11 [1] : vector<16x16xf32> to vector<16xf32>
      %20 = vector.shape_cast %19 : vector<16xf32> to vector<16x1xf32>
      %21 = arith.addf %18, %20 : vector<16x1xf32>
      %c0_12 = arith.constant 0 : index
      %c0_13 = arith.constant 0 : index
      %22 = vector.load %arg5[%c0_12, %c0_13] : memref<16x1xf32, #tpu.memory_space<vmem>>, vector<16x1xf32>
      tpu.vector_store %arg5[%c0_12, %c0_13], %21 {strides = array<i32>} : memref<16x1xf32, #tpu.memory_space<vmem>>, vector<16x1xf32>,
    } else {
    }
    %12 = arith.cmpi eq, %arg0, %arg1 : i32
    %13 = arith.extui %12 : i1 to i32
    %c0_i32_6 = arith.constant 0 : i32
    %14 = arith.cmpi ne, %13, %c0_i32_6 : i32
    scf.if %14 {
      %18 = tpu.iota {dimensions = array<i32: 0>} : vector<16x16xi32>
      %19 = tpu.iota {dimensions = array<i32: 1>} : vector<16x16xi32>
      %20 = arith.cmpi eq, %18, %19 : vector<16x16xi32>
      %c0_9 = arith.constant 0 : index
      %c0_10 = arith.constant 0 : index
      %21 = vector.load %arg5[%c0_9, %c0_10] : memref<16x1xf32, #tpu.memory_space<vmem>>, vector<16x1xf32>
      %cst_11 = arith.constant 0.000000e+00 : f32
      %22 = vector.broadcast %cst_11 : f32 to vector<16x16xf32>
      %23 = arith.select %20, %22, %8 : vector<16x16xi1>, vector<16x16xf32>
      %cst_12 = arith.constant dense<0.000000e+00> : vector<16xf32>
      %24 = vector.multi_reduction <add>, %23, %cst_12 [1] : vector<16x16xf32> to vector<16xf32>
      %25 = vector.shape_cast %24 : vector<16xf32> to vector<16x1xf32>
      %26 = arith.addf %21, %25 : vector<16x1xf32>
      %c0_13 = arith.constant 0 : index
      %c0_14 = arith.constant 0 : index
      %27 = vector.load %arg5[%c0_13, %c0_14] : memref<16x1xf32, #tpu.memory_space<vmem>>, vector<16x1xf32>
      tpu.vector_store %arg5[%c0_13, %c0_14], %26 {strides = array<i32>} : memref<16x1xf32, #tpu.memory_space<vmem>>, vector<16x1xf32>,
    } else {
    }
    %c0_i32_7 = arith.constant 0 : i32
    %15 = arith.cmpi eq, %arg1, %c0_i32_7 : i32
    %16 = arith.extui %15 : i1 to i32
    %c0_i32_8 = arith.constant 0 : i32
    %17 = arith.cmpi ne, %16, %c0_i32_8 : i32
    scf.if %17 {
      %c0_9 = arith.constant 0 : index
      %c0_10 = arith.constant 0 : index
      %18 = vector.load %arg5[%c0_9, %c0_10] : memref<16x1xf32, #tpu.memory_space<vmem>>, vector<16x1xf32>
      %19 = math.log %18 : vector<16x1xf32>
      %c0_11 = arith.constant 0 : index
      %c0_12 = arith.constant 0 : index
      %20 = vector.load %arg4[%c0_11, %c0_12] : memref<16x1xf32, #tpu.memory_space<vmem>>, vector<16x1xf32>
      tpu.vector_store %arg4[%c0_11, %c0_12], %19 {strides = array<i32>} : memref<16x1xf32, #tpu.memory_space<vmem>>, vector<16x1xf32>,
    } else {
    }
    return
  }
  func.func @transform_0(%arg0: i32, %arg1: i32) -> (i32, i32) {
    %c0_i32 = arith.constant 0 : i32
    %c0_i32_0 = arith.constant 0 : i32
    return %arg0, %c0_i32 : i32, i32
  }
  func.func @transform_1(%arg0: i32, %arg1: i32) -> (i32, i32) {
    %c0_i32 = arith.constant 0 : i32
    %c0_i32_0 = arith.constant 0 : i32
    return %c0_i32, %arg1 : i32, i32
  }
  func.func @transform_2(%arg0: i32, %arg1: i32) -> (i32, i32) {
    %c0_i32 = arith.constant 0 : i32
    %c0_i32_0 = arith.constant 0 : i32
    return %arg0, %c0_i32 : i32, i32
  }
}

</mosaic_0001>

<llo_original>
// kernel: tpu_custom_call.1
$region0: #{tpu_custom_call.1}
  #allocation0 [shape = 'u32[]', space=smem, size = 0x4, offset = 0x4, fixed_abs, tag = 'smem constant byte address 0x4 - core index']
  #allocation1 [shape = 'u32[144,128]{1,0:T(1,128)}', space=vmem, size = 0x12000, scoped, tag = 'internal scratch']
  #allocation2 [shape = 'f32[16,1]{1,0:T(8,128)}', space=vmem, size = 0x2000, scoped, tag = 'scratch operand']
  %s0 = inlined_call_operand.vmem [shape: f32[16,32], index: 0, kind: input, shape index: {}]
  %s1 = inlined_call_operand.vmem [shape: f32[32,16], index: 1, kind: input, shape index: {}]
  %s2 = inlined_call_operand.vmem [shape: f32[16,1], index: 2, kind: output, shape index: {}]
  %s3 = sld [smem:[#allocation0]]
  $region34: #{tpu_custom_call.1} parent=0
    _
  %s5 = ssub.s32 1, %s3
  %s6 = scalar_select 0, %s5, %s3
  // Predicated region
  $region2: #{tpu_custom_call.1} parent=0 // pred_check
    _
  $region3: #{tpu_custom_call.1} parent=0 // pred_check_branch
    %8 = sbr.rel (0) target = $region5
  $region4: #{tpu_custom_call.1} parent=0 // pred_region
    _
  $region5: #{tpu_custom_call.1} parent=0 // pred_fallthru
    _
  // Predicated region
  $region6: #{tpu_custom_call.1} parent=0 // pred_check
    _
  $region7: #{tpu_custom_call.1} parent=0 // pred_check_branch
    %10 = sbr.rel (0) target = $region9
  $region8: #{tpu_custom_call.1} parent=0 // pred_region
    _
  $region9: #{tpu_custom_call.1} parent=0 // pred_fallthru
    _
  %p11 = scmp.eq.s32.totalorder 0, 0
  // Predicated region
  $region10: #{tpu_custom_call.1} parent=0 // pred_check
    %p12 = pneg %p11
  $region11: #{tpu_custom_call.1} parent=0 // pred_check_branch
    %14 = sbr.rel (%p12) target = $region13
  $region12: #{tpu_custom_call.1} parent=0 // pred_region
    %vm15 = vcmask 7168
    %16 = vst.msk [vmem:[#allocation2] sm:$0xff] %vm15, 0.0
    %17 = vst.msk [vmem:[#allocation2 + $0x8] sm:$0xff] %vm15, 0.0
  $region13: #{tpu_custom_call.1} parent=0 // pred_fallthru
    _
  %v18 = vld [vmem:[%s0] sm:$0xff]
  %v19 = vld [vmem:[%s0 + $0x8] sm:$0xff]
  %v20 = vld [vmem:[%s1] sm:$0xff]
  %v21 = vld [vmem:[%s1 + $0x8] sm:$0xff]
  %v22 = vld [vmem:[%s1 + $0x10] sm:$0xff]
  %v23 = vld [vmem:[%s1 + $0x18] sm:$0xff]
  %vm24 = vcmask 261120
  %v26 = vsel %vm24, %v18, 0
  %v29 = vsel %vm24, %v19, 0
  %31 = vmatprep.subr.mxu0 0.0
  %32 = vmatpush1.msra.mxu0 %v20
  %33 = vmatprep.subr.mxu0 0.0
  %34 = vmatpush1.msra.mxu0 %v21
  %35 = vmatprep.subr.mxu0 0.0
  %36 = vmatpush1.msra.mxu0 %v22
  %37 = vmatprep.subr.mxu0 0.0
  %38 = vmatpush1.msra.mxu0 %v23
  %39 = vmatprep.subr.mxu0 0.0
  %40 = vmatpush1.msra.mxu0 0.0
  %41 = vmatprep.subr.mxu0 0.0
  %42 = vmatpush1.msra.mxu0 0.0
  %43 = vmatprep.subr.mxu0 0.0
  %44 = vmatpush1.msra.mxu0 0.0
  %45 = vmatprep.subr.mxu0 0.0
  %46 = vmatpush1.msra.mxu0 0.0
  %47 = vmatprep.subr.mxu0 0.0
  %48 = vmatpush1.msra.mxu0 0.0
  %49 = vmatprep.subr.mxu0 0.0
  %50 = vmatpush1.msra.mxu0 0.0
  %51 = vmatprep.subr.mxu0 0.0
  %52 = vmatpush1.msra.mxu0 0.0
  %53 = vmatprep.subr.mxu0 0.0
  %54 = vmatpush1.msra.mxu0 0.0
  %55 = vmatprep.subr.mxu0 0.0
  %56 = vmatpush1.msra.mxu0 0.0
  %57 = vmatprep.subr.mxu0 0.0
  %58 = vmatpush1.msra.mxu0 0.0
  %59 = vmatprep.subr.mxu0 0.0
  %60 = vmatpush1.msra.mxu0 0.0
  %61 = vmatprep.subr.mxu0 0.0
  %62 = vmatpush1.msra.mxu0 0.0
  %63 = vmatprep.subr.mxu0 0.0
  %64 = vmatpush1.msra.mxu0 0.0
  %65 = vmatprep.subr.mxu0 0.0
  %66 = vmatpush1.msra.mxu0 0.0
  %67 = vmatprep.subr.mxu0 0.0
  %68 = vmatpush1.msra.mxu0 0.0
  %69 = vmatprep.subr.mxu0 0.0
  %70 = vmatpush1.msra.mxu0 0.0
  %71 = vmatprep.subr.mxu0 0.0
  %72 = vmatpush1.msra.mxu0 0.0
  %73 = vmatprep.subr.mxu0 0.0
  %74 = vmatpush1.msra.mxu0 0.0
  %75 = vmatprep.subr.mxu0 0.0
  %76 = vmatpush1.msra.mxu0 0.0
  %77 = vmatprep.subr.mxu0 0.0
  %78 = vmatpush1.msra.mxu0 0.0
  %79 = vmatprep.subr.mxu0 0.0
  %80 = vmatpush1.msra.mxu0 0.0
  %81 = vmatprep.subr.mxu0 0.0
  %82 = vmatpush1.msra.mxu0 0.0
  %83 = vmatprep.subr.mxu0 0.0
  %84 = vmatpush1.msra.mxu0 0.0
  %85 = vmatprep.subr.mxu0 0.0
  %86 = vmatpush1.msra.mxu0 0.0
  %87 = vmatprep.subr.mxu0 0.0
  %88 = vmatpush1.msra.mxu0 0.0
  %89 = vmatprep.subr.mxu0 0.0
  %90 = vmatpush1.msra.mxu0 0.0
  %91 = vmatprep.subr.mxu0 0.0
  %92 = vmatpush1.msra.mxu0 0.0
  %93 = vmatprep.subr.mxu0 0.0
  %94 = vmatpush1.msra.mxu0 0.0
  %95 = vmatprep.mubr.f32.mxu0 0.0
  %96 = vmatmul.mubr.f32.gmra.mrb[0].mxu0 %v26
  %v97 = vpop.f32.mrb[0].mxu0
  %v98 = vadd.f32 0.0, %v97
  %v99 = vpop.f32.mrb[0].mxu0
  %100 = vmatprep.mubr.f32.mxu0 0.0
  %101 = vmatmul.mubr.f32.gmra.mrb[0].mxu0 %v29
  %v102 = vpop.f32.mrb[0].mxu0
  %v103 = vadd.f32 0.0, %v102
  %v104 = vpop.f32.mrb[0].mxu0
  %105 = vdwg.mxu0
  %v106 = vsub.f32 %v98, 14.285714
  %v107 = vsub.f32 %v103, 14.285714
  %v108 = vmul.f32 %v106, 1.442695
  %v109 = vpow.pop %v108
  %v110 = vmul.f32 %v107, 1.442695
  %v111 = vpow.pop %v110
  %p112 = scmp.ne.s32.totalorder 0, 0
  // Predicated region
  $region14: #{tpu_custom_call.1} parent=0 // pred_check
    %p113 = pneg %p112
  $region15: #{tpu_custom_call.1} parent=0 // pred_check_branch
    %115 = sbr.rel (%p113) target = $region17
  $region16: #{tpu_custom_call.1} parent=0 // pred_region
    %v116 = vld [vmem:[#allocation2] sm:$0xff]
    %v117 = vld [vmem:[#allocation2 + $0x8] sm:$0xff]
    %vm118 = vcmask 130048
    %v119 = vsel %vm118, %v109, 0.0
    %120 = vadd.xlane.f32.xlu0 %v119
    %v121 = vpop.xlane.xlu0 %120
    %v122 = vsel %vm118, %v111, 0.0
    %123 = vadd.xlane.f32.xlu0 %v122
    %v124 = vpop.xlane.xlu0 %123
    %v125 = vadd.f32 %v116, %v121
    %v126 = vadd.f32 %v117, %v124
    %vm127 = vcmask 7168
    %128 = vst.msk [vmem:[#allocation2] sm:$0xff] %vm127, %v125
    %129 = vst.msk [vmem:[#allocation2 + $0x8] sm:$0xff] %vm127, %v126
  $region17: #{tpu_custom_call.1} parent=0 // pred_fallthru
    _
  %p130 = scmp.eq.s32.totalorder 0, 0
  // Predicated region
  $region18: #{tpu_custom_call.1} parent=0 // pred_check
    %p131 = pneg %p130
  $region19: #{tpu_custom_call.1} parent=0 // pred_check_branch
    %133 = sbr.rel (%p131) target = $region21
  $region20: #{tpu_custom_call.1} parent=0 // pred_region
    %v134 = vlaneseq
    %v135 = vshrl.u32 %v134, 7
    %v136 = vadd.s32 %v135, 8
    %v137 = vlaneseq
    %v138 = vand.u32 %v137, 127
    %vm139 = vcmp.eq.s32.totalorder %v135, %v138
    %vm140 = vcmp.eq.s32.totalorder %v136, %v138
    %v141 = vld [vmem:[#allocation2] sm:$0xff]
    %v142 = vld [vmem:[#allocation2 + $0x8] sm:$0xff]
    %v143 = vsel %vm139, 0.0, %v109
    %v144 = vsel %vm140, 0.0, %v111
    %vm145 = vcmask 130048
    %v146 = vsel %vm145, %v143, 0.0
    %147 = vadd.xlane.f32.xlu0 %v146
    %v148 = vpop.xlane.xlu0 %147
    %v149 = vsel %vm145, %v144, 0.0
    %150 = vadd.xlane.f32.xlu0 %v149
    %v151 = vpop.xlane.xlu0 %150
    %v152 = vadd.f32 %v141, %v148
    %v153 = vadd.f32 %v142, %v151
    %vm154 = vcmask 7168
    %155 = vst.msk [vmem:[#allocation2] sm:$0xff] %vm154, %v152
    %156 = vst.msk [vmem:[#allocation2 + $0x8] sm:$0xff] %vm154, %v153
  $region21: #{tpu_custom_call.1} parent=0 // pred_fallthru
    _
  // Predicated region
  $region22: #{tpu_custom_call.1} parent=0 // pred_check
    %p157 = pneg %p11
  $region23: #{tpu_custom_call.1} parent=0 // pred_check_branch
    %159 = sbr.rel (%p157) target = $region25
  $region24: #{tpu_custom_call.1} parent=0 // pred_region
    %v160 = vld [vmem:[#allocation2] sm:$0xff]
    %v161 = vld [vmem:[#allocation2 + $0x8] sm:$0xff]
    %v162 = vlog2.pop %v160
    %v163 = vmul.f32 %v162, 0.6931472
    %v164 = vlog2.pop %v161
    %v165 = vmul.f32 %v164, 0.6931472
    %vm166 = vcmask 7168
    %167 = vst.msk [vmem:[%s2] sm:$0xff] %vm166, %v163
    %168 = vst.msk [vmem:[%s2 + $0x8] sm:$0xff] %vm166, %v165
  $region25: #{tpu_custom_call.1} parent=0 // pred_fallthru
    _
  // Predicated region
  $region26: #{tpu_custom_call.1} parent=0 // pred_check
    _
  $region27: #{tpu_custom_call.1} parent=0 // pred_check_branch
    %170 = sbr.rel (0) target = $region29
  $region28: #{tpu_custom_call.1} parent=0 // pred_region
    _
  $region29: #{tpu_custom_call.1} parent=0 // pred_fallthru
    _
  // Predicated region
  $region30: #{tpu_custom_call.1} parent=0 // pred_check
    _
  $region31: #{tpu_custom_call.1} parent=0 // pred_check_branch
    %172 = sbr.rel (0) target = $region33
  $region32: #{tpu_custom_call.1} parent=0 // pred_region
    _
  $region33: #{tpu_custom_call.1} parent=0 // pred_fallthru
    _

</llo_original>
